<compile_context>
chip_gen: v7x
topology: tpu7x:2x2x1
jax: 0.10.0
libtpu: 0.0.40
codegen_flags: <defaults>
</compile_context>

<pallas_src>
import jax
import jax.numpy as jnp
from jax import lax
from jax.experimental import pallas as pl
from jax.experimental.pallas import tpu as pltpu

LN_EPS = 1e-5  # torch.nn.LayerNorm default eps

_HAS_KERNEL_PRNG = hasattr(pltpu, "prng_seed") and hasattr(pltpu, "stateful_normal")


def _round_up(x, m):
    return ((x + m - 1) // m) * m


def _layernorm(h, gamma, beta):
    # Two-pass statistics (numerically stable); the extra XLU reduction is free
    # in this memory-bound kernel.
    mu = jnp.mean(h, axis=-1, keepdims=True)
    d = h - mu
    var = jnp.mean(d * d, axis=-1, keepdims=True)
    return d * lax.rsqrt(var + LN_EPS) * gamma + beta


# ------------------------------- kernels -------------------------------------

def _vae_train_prng_kernel(seed_ref, x_ref, wcat_ref, wl2h_ref, gamma_ref,
                           beta_ref, out_ref, ml_ref):
    """Train mode, eps drawn in-kernel (no eps HBM stream)."""
    mm = wcat_ref.dtype
    x = x_ref[...].astype(mm)                                          # (TB, H)
    ml = jnp.dot(x, wcat_ref[...], preferred_element_type=jnp.float32)  # (TB, 2Lp)
    ml_ref[...] = ml.astype(ml_ref.dtype)

    Lp = wl2h_ref.shape[0]
    mean = ml[:, :Lp]
    logvar = ml[:, Lp:]

    # Per-tile seed so each grid step draws different randoms.
    pltpu.prng_seed(seed_ref[0] + pl.program_id(0))
    eps = pltpu.stateful_normal(mean.shape, jnp.float32)
    # Padded lanes: mean=logvar=0 -> z=eps there, annihilated by the zero rows
    # L..Lp of w_l2h.  exp(0)=1, so no NaN hazard.
    z = eps * jnp.exp(0.5 * logvar) + mean                             # (TB, Lp) f32

    h = jnp.dot(z.astype(mm), wl2h_ref[...], preferred_element_type=jnp.float32)
    out_ref[...] = _layernorm(h, gamma_ref[...], beta_ref[...]).astype(out_ref.dtype)


def _vae_train_eps_kernel(x_ref, wcat_ref, wl2h_ref, eps_ref, gamma_ref,
                          beta_ref, out_ref, ml_ref):
    """Train mode with an externally supplied eps stream (reproducible tests)."""
    mm = wcat_ref.dtype
    x = x_ref[...].astype(mm)
    ml = jnp.dot(x, wcat_ref[...], preferred_element_type=jnp.float32)
    ml_ref[...] = ml.astype(ml_ref.dtype)

    Lp = wl2h_ref.shape[0]
    mean = ml[:, :Lp]
    logvar = ml[:, Lp:]
    z = eps_ref[...] * jnp.exp(0.5 * logvar) + mean

    h = jnp.dot(z.astype(mm), wl2h_ref[...], preferred_element_type=jnp.float32)
    out_ref[...] = _layernorm(h, gamma_ref[...], beta_ref[...]).astype(out_ref.dtype)


def _vae_infer_kernel(x_ref, wproj_ref, wl2h_ref, gamma_ref, beta_ref,
                      out_ref, ml_ref):
    """Inference: z = mean.  wproj is either the fused [mean|logvar] slab or the
    mean-only slab (serving fast path, ml_ref then holds just the mean)."""
    mm = wproj_ref.dtype
    x = x_ref[...].astype(mm)
    ml = jnp.dot(x, wproj_ref[...], preferred_element_type=jnp.float32)
    ml_ref[...] = ml.astype(ml_ref.dtype)

    Lp = wl2h_ref.shape[0]
    z = ml[:, :Lp]                                                      # z = mean
    h = jnp.dot(z.astype(mm), wl2h_ref[...], preferred_element_type=jnp.float32)
    out_ref[...] = _layernorm(h, gamma_ref[...], beta_ref[...]).astype(out_ref.dtype)


# ------------------------------- wrapper --------------------------------------

def prepare_params(params, matmul_dtype=jnp.bfloat16):
    """One-time weight prep: transpose, fuse mean/logvar, lane-pad, cast.

    Call once at init: removes per-call HBM transposes and builds the fused
    (H, 2*Lp) projection slab plus a mean-only slab for the serving fast path.
    # TODO(synk): on v7x, fp8 weight storage (MXU fp8, f32 accumulate) would
    # halve resident VMEM; needs an accuracy check; not valid on v5e/v6e.
    """
    w_mean = jnp.asarray(params["w_mean"], jnp.float32)      # (L, H) torch layout
    w_logvar = jnp.asarray(params["w_logvar"], jnp.float32)  # (L, H)
    w_l2h = jnp.asarray(params["w_lat2hid"], jnp.float32)    # (H, L)
    L, H = w_mean.shape
    Lp = _round_up(max(L, 1), 128)                           # lane-dense latent dim

    w_cat = jnp.zeros((H, 2 * Lp), dtype=matmul_dtype)
    w_cat = w_cat.at[:, :L].set(w_mean.T.astype(matmul_dtype))
    w_cat = w_cat.at[:, Lp:Lp + L].set(w_logvar.T.astype(matmul_dtype))

    w_l2h_p = jnp.zeros((Lp, H), dtype=matmul_dtype)
    w_l2h_p = w_l2h_p.at[:L, :].set(w_l2h.T.astype(matmul_dtype))

    gamma = jnp.asarray(params["ln_gamma"]).reshape(1, H).astype(jnp.float32)
    beta = jnp.asarray(params["ln_beta"]).reshape(1, H).astype(jnp.float32)

    return {"w_cat": w_cat,
            "w_mean": w_cat[:, :Lp],     # materialized once; mean-only fast path
            "w_l2h": w_l2h_p,
            "gamma": gamma, "beta": beta,
            "hidden_size": H, "latent_size": L, "latent_padded": Lp}


def _vmem_cap_bytes():
    # ~80% of physical VMEM: ~51 MiB on v7x (64 MiB), ~102 MiB on v5e/v6e (128 MiB).
    try:
        phys = int(pltpu.get_tpu_info().vmem_capacity_bytes)
    except Exception:
        phys = 128 << 20
    return max(16 << 20, int(phys * 0.80))


def _pick_tb(B, block_b, needed_fn, cap):
    # >=2 batch tiles whenever B>8 so the "parallel" grid axis can shard across
    # both TensorCores on v7x; otherwise tiles target block_b rows and shrink to
    # fit the VMEM budget.
    n_tiles = max(2, -(-B // block_b)) if B > 8 else 1
    tb = _round_up(-(-B // n_tiles), 8)
    tb = max(8, min(tb, _round_up(B, 8)))
    while tb > 8 and needed_fn(tb) > cap:
        tb = max(8, _round_up(tb // 2, 8))
    return tb


def vae_forward(x, prep, *, mode="train", seed=0, eps=None, rng_key=None,
                block_b=512, out_dtype=jnp.float32, ml_dtype=jnp.float32,
                need_logvar=True):
    """Fused VaE forward.  `prep` comes from prepare_params().

    Returns (out, mean, logvar).  logvar is None only for the opt-in serving
    fast path (mode='inference', need_logvar=False)."""
    B, H = x.shape
    L = prep["latent_size"]
    Lp = prep["latent_padded"]
    assert H == prep["hidden_size"]
    if mode not in ("train", "inference"):
        raise NotImplementedError(mode)

    mean_only = (mode == "inference") and (not need_logvar)
    ml_cols = Lp if mean_only else 2 * Lp
    use_kernel_prng = (mode == "train") and (eps is None) and _HAS_KERNEL_PRNG
    with_eps_stream = (mode == "train") and not use_kernel_prng

    w_item = jnp.dtype(prep["w_cat"].dtype).itemsize
    x_item = jnp.dtype(x.dtype).itemsize
    out_item = jnp.dtype(out_dtype).itemsize
    ml_item = jnp.dtype(ml_dtype).itemsize
    # Single-buffered resident weights + gamma/beta.
    w_resident = (H * ml_cols + Lp * H) * w_item + 2 * H * 4

    def needed(tb):
        per_buf = tb * H * x_item + tb * H * out_item + tb * ml_cols * ml_item
        if with_eps_stream:
            per_buf += tb * Lp * 4
        return w_resident + 2 * per_buf          # only activations double-buffered

    cap = _vmem_cap_bytes()
    TB = _pick_tb(B, block_b, needed, cap)
    steps = pl.cdiv(B, TB)
    B_pad = steps * TB
    grid = (steps,)

    vmem_limit = int(max(8 << 20, min(cap, needed(TB) + (4 << 20))))
    cparams = pltpu.CompilerParams(
        dimension_semantics=("parallel",),       # batch tiles independent
        vmem_limit_bytes=vmem_limit)

    x_in = x if B_pad == B else jnp.pad(x, ((0, B_pad - B), (0, 0)))

    row = lambda i, *_: (i, 0)      # *_ absorbs scalar-prefetch refs
    const = lambda i, *_: (0, 0)

    def _const_spec(shape, single):
        if single:
            try:  # single-buffer the VMEM-resident operands
                return pl.BlockSpec(shape, const, pipeline_mode=pl.Buffered(1))
            except TypeError:
                pass
        return pl.BlockSpec(shape, const)

    x_spec = pl.BlockSpec((TB, H), row)
    out_spec = pl.BlockSpec((TB, H), row)
    ml_spec = pl.BlockSpec((TB, ml_cols), row)
    out_shapes = (jax.ShapeDtypeStruct((B_pad, H), out_dtype),
                  jax.ShapeDtypeStruct((B_pad, ml_cols), ml_dtype))

    def _in_specs(single):
        specs = [x_spec,
                 _const_spec((H, ml_cols), single),
                 _const_spec((Lp, H), single)]
        if with_eps_stream:
            specs.append(pl.BlockSpec((TB, Lp), row))
        specs += [_const_spec((1, H), single), _const_spec((1, H), single)]
        return specs

    def _call(kernel, nsp, args, single):
        gs = pltpu.PrefetchScalarGridSpec(
            num_scalar_prefetch=nsp, grid=grid,
            in_specs=_in_specs(single), out_specs=(out_spec, ml_spec))
        return pl.pallas_call(kernel, grid_spec=gs, out_shape=out_shapes,
                              compiler_params=cparams)(*args)

    def call(kernel, nsp, args):
        try:
            return _call(kernel, nsp, args, single=True)
        except Exception:
            # Fallback: let the pipeline double-buffer the weights (VMEM only).
            return _call(kernel, nsp, args, single=False)

    if mode == "inference":
        wproj = prep["w_mean"] if mean_only else prep["w_cat"]
        out, ml = call(_vae_infer_kernel, 0,
                       (x_in, wproj, prep["w_l2h"], prep["gamma"], prep["beta"]))
    else:  # train
        out = ml = None
        if use_kernel_prng:
            try:
                seed_arr = jnp.asarray([seed], dtype=jnp.int32)
                out, ml = call(_vae_train_prng_kernel, 1,
                               (seed_arr, x_in, prep["w_cat"], prep["w_l2h"],
                                prep["gamma"], prep["beta"]))
            except Exception:
                with_eps_stream = True          # picked up by _in_specs closure
        if out is None:
            # External / host-generated eps (reproducible; also the fallback).
            if eps is None:
                key = rng_key if rng_key is not None else jax.random.PRNGKey(seed)
                # Generated directly at (B_pad, Lp): padded-lane randoms are
                # annihilated by the zero rows of w_l2h, so no jnp.pad needed.
                eps_full = jax.random.normal(key, (B_pad, Lp), dtype=jnp.float32)
            else:
                eps = jnp.asarray(eps, jnp.float32)
                eps_full = jnp.zeros((B_pad, Lp), jnp.float32)
                eps_full = eps_full.at[:eps.shape[0], :eps.shape[1]].set(eps)
            out, ml = call(_vae_train_eps_kernel, 0,
                           (x_in, prep["w_cat"], prep["w_l2h"], eps_full,
                            prep["gamma"], prep["beta"]))

    if B_pad != B:
        out = out[:B]
        ml = ml[:B]
    mean = ml[:, :L]
    logvar = None if mean_only else ml[:, Lp:Lp + L]
    return out, mean, logvar

    # TODO(synk): sample_prior() (standalone prior sampling) not implemented; it
    # reuses latent_to_hidden + LayerNorm and could share the inference kernel.


# ------------------------------ reference ------------------------------------

def init_params(key, hidden_size, latent_size):
    """Deterministic synthetic init matching the module's parameter shapes."""
    k1, k2, k3 = jax.random.split(key, 3)
    s_h = 1.0 / jnp.sqrt(hidden_size)
    s_l = 1.0 / jnp.sqrt(latent_size)
    return {
        # torch nn.Linear convention: weight shape = (out_features, in_features)
        "w_mean": jax.random.uniform(k1, (latent_size, hidden_size),
                                     minval=-s_h, maxval=s_h, dtype=jnp.float32),
        "w_logvar": jax.random.uniform(k2, (latent_size, hidden_size),
                                       minval=-s_h, maxval=s_h, dtype=jnp.float32),
        "w_lat2hid": jax.random.uniform(k3, (hidden_size, latent_size),
                                        minval=-s_l, maxval=s_l, dtype=jnp.float32),
        "ln_gamma": jnp.ones((hidden_size,), dtype=jnp.float32),
        "ln_beta": jnp.zeros((hidden_size,), dtype=jnp.float32),
    }


def vae_reference(x, params, eps=None):
    """Pure-JAX reference (f32, highest matmul precision)."""
    hp = lax.Precision.HIGHEST
    mean = jnp.dot(x, params["w_mean"].T, precision=hp)
    logvar = jnp.dot(x, params["w_logvar"].T, precision=hp)
    z = mean if eps is None else eps * jnp.exp(0.5 * logvar) + mean
    h = jnp.dot(z, params["w_lat2hid"].T, precision=hp)
    mu = jnp.mean(h, axis=-1, keepdims=True)
    var = jnp.mean((h - mu) ** 2, axis=-1, keepdims=True)
    out = (h - mu) / jnp.sqrt(var + LN_EPS) * params["ln_gamma"] + params["ln_beta"]
    return out, mean, logvar


if __name__ == "__main__":
    # NOTE: toy shapes — everything here is launch/DMA latency bound; benchmark
    # at production B/H/L with min-of-N xprof timings.
    B, H, L = 8, 32, 16

    key = jax.random.PRNGKey(0)
    k_params, k_x, k_eps = jax.random.split(key, 3)
    params = init_params(k_params, H, L)
    x = jax.random.normal(k_x, (B, H), dtype=jnp.float32)
    eps = jax.random.normal(k_eps, (B, L), dtype=jnp.float32)

    ref_out, ref_mean, ref_logvar = vae_reference(x, params, eps)
    ref_out_i, ref_mean_i, _ = vae_reference(x, params, eps=None)

    # --- f32 MXU path, external eps (tight deterministic check) ---------------
    prep_f32 = prepare_params(params, matmul_dtype=jnp.float32)
    out, mean, logvar = vae_forward(x, prep_f32, mode="train", eps=eps)
    jax.block_until_ready((out, mean, logvar))
    assert jnp.allclose(mean, ref_mean, atol=1e-3, rtol=1e-3)
    assert jnp.allclose(logvar, ref_logvar, atol=1e-3, rtol=1e-3)
    assert jnp.allclose(out, ref_out, atol=1e-3, rtol=1e-3)

    # --- bf16 weights + bf16 x stream + bf16 out (production-ish) -------------
    prep_bf16 = prepare_params(params, matmul_dtype=jnp.bfloat16)
    out16, mean16, logvar16 = vae_forward(x.astype(jnp.bfloat16), prep_bf16,
                                          mode="train", eps=eps,
                                          out_dtype=jnp.bfloat16)
    jax.block_until_ready(out16)
    assert jnp.allclose(mean16, ref_mean, atol=1e-1, rtol=1e-1)
    assert jnp.allclose(logvar16, ref_logvar, atol=1e-1, rtol=1e-1)
    assert jnp.allclose(out16.astype(jnp.float32), ref_out, atol=2e-1, rtol=2e-1)

    # --- train with in-kernel PRNG (no eps HBM stream) -------------------------
    out_p, mean_p, logvar_p = vae_forward(x, prep_f32, mode="train", seed=123)
    jax.block_until_ready(out_p)
    assert jnp.allclose(mean_p, ref_mean, atol=1e-3, rtol=1e-3)
    assert jnp.allclose(logvar_p, ref_logvar, atol=1e-3, rtol=1e-3)
    assert bool(jnp.all(jnp.isfinite(out_p)))
    # Structural LayerNorm check (gamma=1, beta=0): row-mean ~ 0, row-var ~ 1.
    assert float(jnp.max(jnp.abs(jnp.mean(out_p, axis=-1)))) < 1e-2
    assert float(jnp.max(jnp.abs(jnp.var(out_p, axis=-1) - 1.0))) < 5e-2

    # --- inference mode: z = mean, no eps, no exp ------------------------------
    out_i, mean_i, logvar_i = vae_forward(x, prep_f32, mode="inference")
    jax.block_until_ready(out_i)
    assert jnp.allclose(out_i, ref_out_i, atol=1e-3, rtol=1e-3)
    assert jnp.allclose(mean_i, ref_mean_i, atol=1e-3, rtol=1e-3)
    assert jnp.allclose(logvar_i, ref_logvar, atol=1e-3, rtol=1e-3)

    # --- inference mean-only fast path (logvar skipped) -------------------------
    out_m, mean_m, logvar_m = vae_forward(x, prep_f32, mode="inference",
                                          need_logvar=False)
    jax.block_until_ready(out_m)
    assert logvar_m is None
    assert jnp.allclose(out_m, ref_out_i, atol=1e-3, rtol=1e-3)
    assert jnp.allclose(mean_m, ref_mean_i, atol=1e-3, rtol=1e-3)

    print("KERNEL_OK")
</pallas_src>

<mosaic_0001>
module attributes {stable_mosaic.version = 11 : i64} {
  func.func @_vae_train_eps_kernel(%arg0: i32, %arg1: memref<8x32xf32, #tpu.memory_space<vmem>>, %arg2: memref<32x256xf32, #tpu.memory_space<vmem>>, %arg3: memref<128x32xf32, #tpu.memory_space<vmem>>, %arg4: memref<8x128xf32, #tpu.memory_space<vmem>>, %arg5: memref<1x32xf32, #tpu.memory_space<vmem>>, %arg6: memref<1x32xf32, #tpu.memory_space<vmem>>, %arg7: memref<8x32xf32, #tpu.memory_space<vmem>>, %arg8: memref<8x256xf32, #tpu.memory_space<vmem>>) attributes {dimension_semantics = [#tpu.dimension_semantics<parallel>], iteration_bounds = array<i64: 1>, scalar_prefetch = 0 : i64, scratch_operands = 0 : i64, tpu.core_type = #tpu.core_type<tc>, window_params = [{transform_indices = @transform_0, window_bounds = array<i64: 8, 32>}, {pipeline_mode = #tpu.pipeline_mode<synchronous>, transform_indices = @transform_1, window_bounds = array<i64: 32, 256>}, {pipeline_mode = #tpu.pipeline_mode<synchronous>, transform_indices = @transform_2, window_bounds = array<i64: 128, 32>}, {transform_indices = @transform_3, window_bounds = array<i64: 8, 128>}, {pipeline_mode = #tpu.pipeline_mode<synchronous>, transform_indices = @transform_4, window_bounds = array<i64: 1, 32>}, {pipeline_mode = #tpu.pipeline_mode<synchronous>, transform_indices = @transform_5, window_bounds = array<i64: 1, 32>}, {transform_indices = @transform_6, window_bounds = array<i64: 8, 32>}, {transform_indices = @transform_7, window_bounds = array<i64: 8, 256>}]} {
    %c0 = arith.constant 0 : index
    %c0_0 = arith.constant 0 : index
    %0 = vector.load %arg1[%c0, %c0_0] : memref<8x32xf32, #tpu.memory_space<vmem>>, vector<8x32xf32>
    %c0_1 = arith.constant 0 : index
    %c0_2 = arith.constant 0 : index
    %1 = vector.load %arg2[%c0_1, %c0_2] : memref<32x256xf32, #tpu.memory_space<vmem>>, vector<32x256xf32>
    %cst = arith.constant dense<0.000000e+00> : vector<8x256xf32>
    %2 = tpu.matmul %0, %1, %cst {dimension_numbers = #tpu.dot_dimension_numbers<[1], [0], [0], [1], [0, 0, 1, 1], [], []>} : vector<8x32xf32>, vector<32x256xf32>, vector<8x256xf32> -> vector<8x256xf32>
    %c0_3 = arith.constant 0 : index
    %c0_4 = arith.constant 0 : index
    %3 = vector.load %arg8[%c0_3, %c0_4] : memref<8x256xf32, #tpu.memory_space<vmem>>, vector<8x256xf32>
    tpu.vector_store %arg8[%c0_3, %c0_4], %2 {strides = array<i32>} : memref<8x256xf32, #tpu.memory_space<vmem>>, vector<8x256xf32>,
    %4 = vector.extract_strided_slice %2 {offsets = [0, 0], sizes = [8, 128], strides = [1, 1]} : vector<8x256xf32> to vector<8x128xf32>
    %5 = vector.extract_strided_slice %2 {offsets = [0, 128], sizes = [8, 128], strides = [1, 1]} : vector<8x256xf32> to vector<8x128xf32>
    %c0_5 = arith.constant 0 : index
    %c0_6 = arith.constant 0 : index
    %6 = vector.load %arg4[%c0_5, %c0_6] : memref<8x128xf32, #tpu.memory_space<vmem>>, vector<8x128xf32>
    %cst_7 = arith.constant 5.000000e-01 : f32
    %7 = vector.broadcast %cst_7 : f32 to vector<8x128xf32>
    %8 = arith.mulf %7, %5 : vector<8x128xf32>
    %9 = math.exp %8 : vector<8x128xf32>
    %10 = arith.mulf %6, %9 : vector<8x128xf32>
    %11 = arith.addf %10, %4 : vector<8x128xf32>
    %c0_8 = arith.constant 0 : index
    %c0_9 = arith.constant 0 : index
    %12 = vector.load %arg3[%c0_8, %c0_9] : memref<128x32xf32, #tpu.memory_space<vmem>>, vector<128x32xf32>
    %cst_10 = arith.constant dense<0.000000e+00> : vector<8x32xf32>
    %13 = tpu.matmul %11, %12, %cst_10 {dimension_numbers = #tpu.dot_dimension_numbers<[1], [0], [0], [1], [0, 0, 1, 1], [], []>} : vector<8x128xf32>, vector<128x32xf32>, vector<8x32xf32> -> vector<8x32xf32>
    %c0_11 = arith.constant 0 : index
    %c0_12 = arith.constant 0 : index
    %14 = vector.load %arg5[%c0_11, %c0_12] : memref<1x32xf32, #tpu.memory_space<vmem>>, vector<1x32xf32>
    %c0_13 = arith.constant 0 : index
    %c0_14 = arith.constant 0 : index
    %15 = vector.load %arg6[%c0_13, %c0_14] : memref<1x32xf32, #tpu.memory_space<vmem>>, vector<1x32xf32>
    %cst_15 = arith.constant dense<0.000000e+00> : vector<8xf32>
    %16 = vector.multi_reduction <add>, %13, %cst_15 [1] : vector<8x32xf32> to vector<8xf32>
    %17 = vector.shape_cast %16 : vector<8xf32> to vector<8x1xf32>
    %cst_16 = arith.constant 3.200000e+01 : f32
    %18 = vector.broadcast %cst_16 : f32 to vector<8x1xf32>
    %19 = arith.divf %17, %18 : vector<8x1xf32>
    %20 = vector.broadcast %19 : vector<8x1xf32> to vector<8x32xf32>
    %21 = arith.subf %13, %20 : vector<8x32xf32>
    %22 = arith.mulf %21, %21 : vector<8x32xf32>
    %cst_17 = arith.constant dense<0.000000e+00> : vector<8xf32>
    %23 = vector.multi_reduction <add>, %22, %cst_17 [1] : vector<8x32xf32> to vector<8xf32>
    %24 = vector.shape_cast %23 : vector<8xf32> to vector<8x1xf32>
    %cst_18 = arith.constant 3.200000e+01 : f32
    %25 = vector.broadcast %cst_18 : f32 to vector<8x1xf32>
    %26 = arith.divf %24, %25 : vector<8x1xf32>
    %cst_19 = arith.constant 9.99999974E-6 : f32
    %27 = vector.broadcast %cst_19 : f32 to vector<8x1xf32>
    %28 = arith.addf %26, %27 : vector<8x1xf32>
    %29 = math.rsqrt %28 : vector<8x1xf32>
    %30 = vector.broadcast %29 : vector<8x1xf32> to vector<8x32xf32>
    %31 = arith.mulf %21, %30 : vector<8x32xf32>
    %32 = vector.broadcast %14 : vector<1x32xf32> to vector<8x32xf32>
    %33 = arith.mulf %31, %32 : vector<8x32xf32>
    %34 = vector.broadcast %15 : vector<1x32xf32> to vector<8x32xf32>
    %35 = arith.addf %33, %34 : vector<8x32xf32>
    %c0_20 = arith.constant 0 : index
    %c0_21 = arith.constant 0 : index
    %36 = vector.load %arg7[%c0_20, %c0_21] : memref<8x32xf32, #tpu.memory_space<vmem>>, vector<8x32xf32>
    tpu.vector_store %arg7[%c0_20, %c0_21], %35 {strides = array<i32>} : memref<8x32xf32, #tpu.memory_space<vmem>>, vector<8x32xf32>,
    return
  }
  func.func @transform_0(%arg0: i32) -> (i32, i32) {
    %c0_i32 = arith.constant 0 : i32
    %c0_i32_0 = arith.constant 0 : i32
    return %arg0, %c0_i32 : i32, i32
  }
  func.func @transform_1(%arg0: i32) -> (i32, i32) {
    %c0_i32 = arith.constant 0 : i32
    %c0_i32_0 = arith.constant 0 : i32
    %c0_i32_1 = arith.constant 0 : i32
    return %c0_i32, %c0_i32_0 : i32, i32
  }
  func.func @transform_2(%arg0: i32) -> (i32, i32) {
    %c0_i32 = arith.constant 0 : i32
    %c0_i32_0 = arith.constant 0 : i32
    %c0_i32_1 = arith.constant 0 : i32
    return %c0_i32, %c0_i32_0 : i32, i32
  }
  func.func @transform_3(%arg0: i32) -> (i32, i32) {
    %c0_i32 = arith.constant 0 : i32
    %c0_i32_0 = arith.constant 0 : i32
    return %arg0, %c0_i32 : i32, i32
  }
  func.func @transform_4(%arg0: i32) -> (i32, i32) {
    %c0_i32 = arith.constant 0 : i32
    %c0_i32_0 = arith.constant 0 : i32
    %c0_i32_1 = arith.constant 0 : i32
    return %c0_i32, %c0_i32_0 : i32, i32
  }
  func.func @transform_5(%arg0: i32) -> (i32, i32) {
    %c0_i32 = arith.constant 0 : i32
    %c0_i32_0 = arith.constant 0 : i32
    %c0_i32_1 = arith.constant 0 : i32
    return %c0_i32, %c0_i32_0 : i32, i32
  }
  func.func @transform_6(%arg0: i32) -> (i32, i32) {
    %c0_i32 = arith.constant 0 : i32
    %c0_i32_0 = arith.constant 0 : i32
    return %arg0, %c0_i32 : i32, i32
  }
  func.func @transform_7(%arg0: i32) -> (i32, i32) {
    %c0_i32 = arith.constant 0 : i32
    %c0_i32_0 = arith.constant 0 : i32
    return %arg0, %c0_i32 : i32, i32
  }
}

module attributes {stable_mosaic.version = 11 : i64} {
  func.func @_vae_train_eps_kernel(%arg0: i32, %arg1: memref<8x32xf32, #tpu.memory_space<vmem>>, %arg2: memref<32x256xf32, #tpu.memory_space<vmem>>, %arg3: memref<128x32xf32, #tpu.memory_space<vmem>>, %arg4: memref<8x128xf32, #tpu.memory_space<vmem>>, %arg5: memref<1x32xf32, #tpu.memory_space<vmem>>, %arg6: memref<1x32xf32, #tpu.memory_space<vmem>>, %arg7: memref<8x32xf32, #tpu.memory_space<vmem>>, %arg8: memref<8x256xf32, #tpu.memory_space<vmem>>) attributes {dimension_semantics = [#tpu.dimension_semantics<parallel>], iteration_bounds = array<i64: 1>, scalar_prefetch = 0 : i64, scratch_operands = 0 : i64, tpu.core_type = #tpu.core_type<tc>, window_params = [{transform_indices = @transform_0, window_bounds = array<i64: 8, 32>}, {pipeline_mode = #tpu.pipeline_mode<synchronous>, transform_indices = @transform_1, window_bounds = array<i64: 32, 256>}, {pipeline_mode = #tpu.pipeline_mode<synchronous>, transform_indices = @transform_2, window_bounds = array<i64: 128, 32>}, {transform_indices = @transform_3, window_bounds = array<i64: 8, 128>}, {pipeline_mode = #tpu.pipeline_mode<synchronous>, transform_indices = @transform_4, window_bounds = array<i64: 1, 32>}, {pipeline_mode = #tpu.pipeline_mode<synchronous>, transform_indices = @transform_5, window_bounds = array<i64: 1, 32>}, {transform_indices = @transform_6, window_bounds = array<i64: 8, 32>}, {transform_indices = @transform_7, window_bounds = array<i64: 8, 256>}]} {
    %c0 = arith.constant 0 : index
    %c0_0 = arith.constant 0 : index
    %0 = vector.load %arg1[%c0, %c0_0] : memref<8x32xf32, #tpu.memory_space<vmem>>, vector<8x32xf32>
    %c0_1 = arith.constant 0 : index
    %c0_2 = arith.constant 0 : index
    %1 = vector.load %arg2[%c0_1, %c0_2] : memref<32x256xf32, #tpu.memory_space<vmem>>, vector<32x256xf32>
    %cst = arith.constant dense<0.000000e+00> : vector<8x256xf32>
    %2 = tpu.matmul %0, %1, %cst {dimension_numbers = #tpu.dot_dimension_numbers<[1], [0], [0], [1], [0, 0, 1, 1], [], []>} : vector<8x32xf32>, vector<32x256xf32>, vector<8x256xf32> -> vector<8x256xf32>
    %c0_3 = arith.constant 0 : index
    %c0_4 = arith.constant 0 : index
    %3 = vector.load %arg8[%c0_3, %c0_4] : memref<8x256xf32, #tpu.memory_space<vmem>>, vector<8x256xf32>
    tpu.vector_store %arg8[%c0_3, %c0_4], %2 {strides = array<i32>} : memref<8x256xf32, #tpu.memory_space<vmem>>, vector<8x256xf32>,
    %4 = vector.extract_strided_slice %2 {offsets = [0, 0], sizes = [8, 128], strides = [1, 1]} : vector<8x256xf32> to vector<8x128xf32>
    %5 = vector.extract_strided_slice %2 {offsets = [0, 128], sizes = [8, 128], strides = [1, 1]} : vector<8x256xf32> to vector<8x128xf32>
    %c0_5 = arith.constant 0 : index
    %c0_6 = arith.constant 0 : index
    %6 = vector.load %arg4[%c0_5, %c0_6] : memref<8x128xf32, #tpu.memory_space<vmem>>, vector<8x128xf32>
    %cst_7 = arith.constant 5.000000e-01 : f32
    %7 = vector.broadcast %cst_7 : f32 to vector<8x128xf32>
    %8 = arith.mulf %7, %5 : vector<8x128xf32>
    %9 = math.exp %8 : vector<8x128xf32>
    %10 = arith.mulf %6, %9 : vector<8x128xf32>
    %11 = arith.addf %10, %4 : vector<8x128xf32>
    %c0_8 = arith.constant 0 : index
    %c0_9 = arith.constant 0 : index
    %12 = vector.load %arg3[%c0_8, %c0_9] : memref<128x32xf32, #tpu.memory_space<vmem>>, vector<128x32xf32>
    %cst_10 = arith.constant dense<0.000000e+00> : vector<8x32xf32>
    %13 = tpu.matmul %11, %12, %cst_10 {dimension_numbers = #tpu.dot_dimension_numbers<[1], [0], [0], [1], [0, 0, 1, 1], [], []>} : vector<8x128xf32>, vector<128x32xf32>, vector<8x32xf32> -> vector<8x32xf32>
    %c0_11 = arith.constant 0 : index
    %c0_12 = arith.constant 0 : index
    %14 = vector.load %arg5[%c0_11, %c0_12] : memref<1x32xf32, #tpu.memory_space<vmem>>, vector<1x32xf32>
    %c0_13 = arith.constant 0 : index
    %c0_14 = arith.constant 0 : index
    %15 = vector.load %arg6[%c0_13, %c0_14] : memref<1x32xf32, #tpu.memory_space<vmem>>, vector<1x32xf32>
    %cst_15 = arith.constant dense<0.000000e+00> : vector<8xf32>
    %16 = vector.multi_reduction <add>, %13, %cst_15 [1] : vector<8x32xf32> to vector<8xf32>
    %17 = vector.shape_cast %16 : vector<8xf32> to vector<8x1xf32>
    %cst_16 = arith.constant 3.200000e+01 : f32
    %18 = vector.broadcast %cst_16 : f32 to vector<8x1xf32>
    %19 = arith.divf %17, %18 : vector<8x1xf32>
    %20 = vector.broadcast %19 : vector<8x1xf32> to vector<8x32xf32>
    %21 = arith.subf %13, %20 : vector<8x32xf32>
    %22 = arith.mulf %21, %21 : vector<8x32xf32>
    %cst_17 = arith.constant dense<0.000000e+00> : vector<8xf32>
    %23 = vector.multi_reduction <add>, %22, %cst_17 [1] : vector<8x32xf32> to vector<8xf32>
    %24 = vector.shape_cast %23 : vector<8xf32> to vector<8x1xf32>
    %cst_18 = arith.constant 3.200000e+01 : f32
    %25 = vector.broadcast %cst_18 : f32 to vector<8x1xf32>
    %26 = arith.divf %24, %25 : vector<8x1xf32>
    %cst_19 = arith.constant 9.99999974E-6 : f32
    %27 = vector.broadcast %cst_19 : f32 to vector<8x1xf32>
    %28 = arith.addf %26, %27 : vector<8x1xf32>
    %29 = math.rsqrt %28 : vector<8x1xf32>
    %30 = vector.broadcast %29 : vector<8x1xf32> to vector<8x32xf32>
    %31 = arith.mulf %21, %30 : vector<8x32xf32>
    %32 = vector.broadcast %14 : vector<1x32xf32> to vector<8x32xf32>
    %33 = arith.mulf %31, %32 : vector<8x32xf32>
    %34 = vector.broadcast %15 : vector<1x32xf32> to vector<8x32xf32>
    %35 = arith.addf %33, %34 : vector<8x32xf32>
    %c0_20 = arith.constant 0 : index
    %c0_21 = arith.constant 0 : index
    %36 = vector.load %arg7[%c0_20, %c0_21] : memref<8x32xf32, #tpu.memory_space<vmem>>, vector<8x32xf32>
    tpu.vector_store %arg7[%c0_20, %c0_21], %35 {strides = array<i32>} : memref<8x32xf32, #tpu.memory_space<vmem>>, vector<8x32xf32>,
    return
  }
  func.func @transform_0(%arg0: i32) -> (i32, i32) {
    %c0_i32 = arith.constant 0 : i32
    %c0_i32_0 = arith.constant 0 : i32
    return %arg0, %c0_i32 : i32, i32
  }
  func.func @transform_1(%arg0: i32) -> (i32, i32) {
    %c0_i32 = arith.constant 0 : i32
    %c0_i32_0 = arith.constant 0 : i32
    %c0_i32_1 = arith.constant 0 : i32
    return %c0_i32, %c0_i32_0 : i32, i32
  }
  func.func @transform_2(%arg0: i32) -> (i32, i32) {
    %c0_i32 = arith.constant 0 : i32
    %c0_i32_0 = arith.constant 0 : i32
    %c0_i32_1 = arith.constant 0 : i32
    return %c0_i32, %c0_i32_0 : i32, i32
  }
  func.func @transform_3(%arg0: i32) -> (i32, i32) {
    %c0_i32 = arith.constant 0 : i32
    %c0_i32_0 = arith.constant 0 : i32
    return %arg0, %c0_i32 : i32, i32
  }
  func.func @transform_4(%arg0: i32) -> (i32, i32) {
    %c0_i32 = arith.constant 0 : i32
    %c0_i32_0 = arith.constant 0 : i32
    %c0_i32_1 = arith.constant 0 : i32
    return %c0_i32, %c0_i32_0 : i32, i32
  }
  func.func @transform_5(%arg0: i32) -> (i32, i32) {
    %c0_i32 = arith.constant 0 : i32
    %c0_i32_0 = arith.constant 0 : i32
    %c0_i32_1 = arith.constant 0 : i32
    return %c0_i32, %c0_i32_0 : i32, i32
  }
  func.func @transform_6(%arg0: i32) -> (i32, i32) {
    %c0_i32 = arith.constant 0 : i32
    %c0_i32_0 = arith.constant 0 : i32
    return %arg0, %c0_i32 : i32, i32
  }
  func.func @transform_7(%arg0: i32) -> (i32, i32) {
    %c0_i32 = arith.constant 0 : i32
    %c0_i32_0 = arith.constant 0 : i32
    return %arg0, %c0_i32 : i32, i32
  }
}

</mosaic_0001>

<llo_original>
// kernel: tpu_custom_call.1
$region0: #{tpu_custom_call.1}
  #allocation0 [shape = 'u32[]', space=smem, size = 0x4, offset = 0x4, fixed_abs, tag = 'smem constant byte address 0x4 - core index']
  #allocation1 [shape = 'u32[144,128]{1,0:T(1,128)}', space=vmem, size = 0x12000, scoped, tag = 'internal scratch']
  %s0 = inlined_call_operand.vmem [shape: f32[8,32], index: 0, kind: input, shape index: {}]
  %s1 = inlined_call_operand.vmem [shape: f32[32,256], index: 1, kind: input, shape index: {}]
  %s2 = inlined_call_operand.vmem [shape: f32[128,32], index: 2, kind: input, shape index: {}]
  %s3 = inlined_call_operand.vmem [shape: f32[8,128], index: 3, kind: input, shape index: {}]
  %s4 = inlined_call_operand.vmem [shape: f32[1,32], index: 4, kind: input, shape index: {}]
  %s5 = inlined_call_operand.vmem [shape: f32[1,32], index: 5, kind: input, shape index: {}]
  %s6 = inlined_call_operand.hbm [shape: f32[8,32], index: 6, kind: output, shape index: {0}]
  %s7 = inlined_call_operand.hbm [shape: f32[8,256], index: 7, kind: output, shape index: {1}]
  %8 = xla_tuple %s6, %s7
  %s9 = sld [smem:[#allocation0]]
  $region42: #{tpu_custom_call.1} parent=0
    _
  %s11 = ssub.s32 1, %s9
  %s12 = scalar_select 0, %s11, %s9
  $region1: #{tpu_custom_call.1} parent=0
    #allocation2 [shape = 'u8[4096]{0}', space=vmem, size = 0x1000, scoped, tag = 'output window, operand 0, single buffered']
    #allocation3 [shape = 's32[1]{0}', space=sflag, size = 0x4, scoped, tag = 'scoped memory for tpu_custom_call.1']
    #allocation4 [shape = 'u8[8192]{0}', space=vmem, size = 0x2000, scoped, tag = 'output window, operand 1, single buffered']
    #allocation5 [shape = 's32[1]{0}', space=sflag, size = 0x4, scoped, tag = 'scoped memory for tpu_custom_call.1']
    %13 = vsyncpa [#allocation3], 0
    %14 = vsyncpa [#allocation5], 0
    // Predicated region
    $region2: #{tpu_custom_call.1} parent=1 // pred_check
      _
    $region3: #{tpu_custom_call.1} parent=1 // pred_check_branch
      %16 = sbr.rel (0) target = $region5
    $region4: #{tpu_custom_call.1} parent=1 // pred_region
      _
    $region5: #{tpu_custom_call.1} parent=1 // pred_fallthru
      _
    // Predicated region
    $region6: #{tpu_custom_call.1} parent=1 // pred_check
      _
    $region7: #{tpu_custom_call.1} parent=1 // pred_check_branch
      %18 = sbr.rel (0) target = $region9
    $region8: #{tpu_custom_call.1} parent=1 // pred_region
      _
    $region9: #{tpu_custom_call.1} parent=1 // pred_fallthru
      _
    // Predicated region
    $region10: #{tpu_custom_call.1} parent=1 // pred_check
      _
    $region11: #{tpu_custom_call.1} parent=1 // pred_check_branch
      %20 = sbr.rel (0) target = $region13
    $region12: #{tpu_custom_call.1} parent=1 // pred_region
      _
    $region13: #{tpu_custom_call.1} parent=1 // pred_fallthru
      _
    // Predicated region
    $region14: #{tpu_custom_call.1} parent=1 // pred_check
      _
    $region15: #{tpu_custom_call.1} parent=1 // pred_check_branch
      %22 = sbr.rel (0) target = $region17
    $region16: #{tpu_custom_call.1} parent=1 // pred_region
      _
    $region17: #{tpu_custom_call.1} parent=1 // pred_fallthru
      _
    // Predicated region
    $region18: #{tpu_custom_call.1} parent=1 // pred_check
      _
    $region19: #{tpu_custom_call.1} parent=1 // pred_check_branch
      %24 = sbr.rel (0) target = $region21
    $region20: #{tpu_custom_call.1} parent=1 // pred_region
      _
    $region21: #{tpu_custom_call.1} parent=1 // pred_fallthru
      _
    // Predicated region
    $region22: #{tpu_custom_call.1} parent=1 // pred_check
      _
    $region23: #{tpu_custom_call.1} parent=1 // pred_check_branch
      %26 = sbr.rel (0) target = $region25
    $region24: #{tpu_custom_call.1} parent=1 // pred_region
      _
    $region25: #{tpu_custom_call.1} parent=1 // pred_fallthru
      _
    %v27 = vld [vmem:[%s0] sm:$0xff]
    %v28 = vld [vmem:[%s1] sm:$0xff]
    %v29 = vld [vmem:[%s1 + $0x8] sm:$0xff]
    %v30 = vld [vmem:[%s1 + $0x10] sm:$0xff]
    %v31 = vld [vmem:[%s1 + $0x18] sm:$0xff]
    %v32 = vld [vmem:[%s1 + $0x20] sm:$0xff]
    %v33 = vld [vmem:[%s1 + $0x28] sm:$0xff]
    %v34 = vld [vmem:[%s1 + $0x30] sm:$0xff]
    %v35 = vld [vmem:[%s1 + $0x38] sm:$0xff]
    %vm36 = vcmask 261120
    %v38 = vsel %vm36, %v27, 0
    %40 = vmatprep.subr.mxu0 %v29
    %41 = vmatpush1.msra.mxu0 %v28
    %42 = vmatprep.subr.mxu0 %v31
    %43 = vmatpush1.msra.mxu0 %v30
    %44 = vmatprep.subr.mxu0 %v33
    %45 = vmatpush1.msra.mxu0 %v32
    %46 = vmatprep.subr.mxu0 %v35
    %47 = vmatpush1.msra.mxu0 %v34
    %48 = vmatprep.subr.mxu0 0.0
    %49 = vmatpush1.msra.mxu0 0.0
    %50 = vmatprep.subr.mxu0 0.0
    %51 = vmatpush1.msra.mxu0 0.0
    %52 = vmatprep.subr.mxu0 0.0
    %53 = vmatpush1.msra.mxu0 0.0
    %54 = vmatprep.subr.mxu0 0.0
    %55 = vmatpush1.msra.mxu0 0.0
    %56 = vmatprep.subr.mxu0 0.0
    %57 = vmatpush1.msra.mxu0 0.0
    %58 = vmatprep.subr.mxu0 0.0
    %59 = vmatpush1.msra.mxu0 0.0
    %60 = vmatprep.subr.mxu0 0.0
    %61 = vmatpush1.msra.mxu0 0.0
    %62 = vmatprep.subr.mxu0 0.0
    %63 = vmatpush1.msra.mxu0 0.0
    %64 = vmatprep.subr.mxu0 0.0
    %65 = vmatpush1.msra.mxu0 0.0
    %66 = vmatprep.subr.mxu0 0.0
    %67 = vmatpush1.msra.mxu0 0.0
    %68 = vmatprep.subr.mxu0 0.0
    %69 = vmatpush1.msra.mxu0 0.0
    %70 = vmatprep.subr.mxu0 0.0
    %71 = vmatpush1.msra.mxu0 0.0
    %72 = vmatprep.subr.mxu0 0.0
    %73 = vmatpush1.msra.mxu0 0.0
    %74 = vmatprep.subr.mxu0 0.0
    %75 = vmatpush1.msra.mxu0 0.0
    %76 = vmatprep.subr.mxu0 0.0
    %77 = vmatpush1.msra.mxu0 0.0
    %78 = vmatprep.subr.mxu0 0.0
    %79 = vmatpush1.msra.mxu0 0.0
    %80 = vmatprep.subr.mxu0 0.0
    %81 = vmatpush1.msra.mxu0 0.0
    %82 = vmatprep.subr.mxu0 0.0
    %83 = vmatpush1.msra.mxu0 0.0
    %84 = vmatprep.subr.mxu0 0.0
    %85 = vmatpush1.msra.mxu0 0.0
    %86 = vmatprep.subr.mxu0 0.0
    %87 = vmatpush1.msra.mxu0 0.0
    %88 = vmatprep.subr.mxu0 0.0
    %89 = vmatpush1.msra.mxu0 0.0
    %90 = vmatprep.subr.mxu0 0.0
    %91 = vmatpush1.msra.mxu0 0.0
    %92 = vmatprep.subr.mxu0 0.0
    %93 = vmatpush1.msra.mxu0 0.0
    %94 = vmatprep.subr.mxu0 0.0
    %95 = vmatpush1.msra.mxu0 0.0
    %96 = vmatprep.subr.mxu0 0.0
    %97 = vmatpush1.msra.mxu0 0.0
    %98 = vmatprep.subr.mxu0 0.0
    %99 = vmatpush1.msra.mxu0 0.0
    %100 = vmatprep.subr.mxu0 0.0
    %101 = vmatpush1.msra.mxu0 0.0
    %102 = vmatprep.subr.mxu0 0.0
    %103 = vmatpush1.msra.mxu0 0.0
    %104 = vmatprep.mubr.f32.mxu0 0.0
    %105 = vmatmul.mubr.f32.gmra.mrb[0].mxu0 %v38
    %v106 = vpop.f32.mrb[0].mxu0
    %v107 = vadd.f32 0.0, %v106
    %v108 = vpop.f32.mrb[0].mxu0
    %v109 = vadd.f32 0.0, %v108
    %110 = vdwg.mxu0
    %111 = vst [vmem:[#allocation4] sm:$0xff] %v107
    %112 = vst [vmem:[#allocation4 + $0x8] sm:$0xff] %v109
    %v113 = vld [vmem:[%s3] sm:$0xff]
    %v114 = vmul.f32 %v109, 0.5
    %v115 = vmul.f32 %v114, 1.442695
    %v116 = vpow.pop %v115
    %v117 = vmul.f32 %v113, %v116
    %v118 = vadd.f32 %v117, %v107
    %v119 = vld [vmem:[%s2] sm:$0xff]
    %v120 = vld [vmem:[%s2 + $0x8] sm:$0xff]
    %v121 = vld [vmem:[%s2 + $0x10] sm:$0xff]
    %v122 = vld [vmem:[%s2 + $0x18] sm:$0xff]
    %v123 = vld [vmem:[%s2 + $0x20] sm:$0xff]
    %v124 = vld [vmem:[%s2 + $0x28] sm:$0xff]
    %v125 = vld [vmem:[%s2 + $0x30] sm:$0xff]
    %v126 = vld [vmem:[%s2 + $0x38] sm:$0xff]
    %v127 = vld [vmem:[%s2 + $0x40] sm:$0xff]
    %v128 = vld [vmem:[%s2 + $0x48] sm:$0xff]
    %v129 = vld [vmem:[%s2 + $0x50] sm:$0xff]
    %v130 = vld [vmem:[%s2 + $0x58] sm:$0xff]
    %v131 = vld [vmem:[%s2 + $0x60] sm:$0xff]
    %v132 = vld [vmem:[%s2 + $0x68] sm:$0xff]
    %v133 = vld [vmem:[%s2 + $0x70] sm:$0xff]
    %v134 = vld [vmem:[%s2 + $0x78] sm:$0xff]
    %135 = vmatprep.subr.mxu0 0.0
    %136 = vmatpush1.msra.mxu0 %v119
    %137 = vmatprep.subr.mxu0 0.0
    %138 = vmatpush1.msra.mxu0 %v120
    %139 = vmatprep.subr.mxu0 0.0
    %140 = vmatpush1.msra.mxu0 %v121
    %141 = vmatprep.subr.mxu0 0.0
    %142 = vmatpush1.msra.mxu0 %v122
    %143 = vmatprep.subr.mxu0 0.0
    %144 = vmatpush1.msra.mxu0 %v123
    %145 = vmatprep.subr.mxu0 0.0
    %146 = vmatpush1.msra.mxu0 %v124
    %147 = vmatprep.subr.mxu0 0.0
    %148 = vmatpush1.msra.mxu0 %v125
    %149 = vmatprep.subr.mxu0 0.0
    %150 = vmatpush1.msra.mxu0 %v126
    %151 = vmatprep.subr.mxu0 0.0
    %152 = vmatpush1.msra.mxu0 %v127
    %153 = vmatprep.subr.mxu0 0.0
    %154 = vmatpush1.msra.mxu0 %v128
    %155 = vmatprep.subr.mxu0 0.0
    %156 = vmatpush1.msra.mxu0 %v129
    %157 = vmatprep.subr.mxu0 0.0
    %158 = vmatpush1.msra.mxu0 %v130
    %159 = vmatprep.subr.mxu0 0.0
    %160 = vmatpush1.msra.mxu0 %v131
    %161 = vmatprep.subr.mxu0 0.0
    %162 = vmatpush1.msra.mxu0 %v132
    %163 = vmatprep.subr.mxu0 0.0
    %164 = vmatpush1.msra.mxu0 %v133
    %165 = vmatprep.subr.mxu0 0.0
    %166 = vmatpush1.msra.mxu0 %v134
    %167 = vmatprep.subr.mxu0 0.0
    %168 = vmatpush1.msra.mxu0 0.0
    %169 = vmatprep.subr.mxu0 0.0
    %170 = vmatpush1.msra.mxu0 0.0
    %171 = vmatprep.subr.mxu0 0.0
    %172 = vmatpush1.msra.mxu0 0.0
    %173 = vmatprep.subr.mxu0 0.0
    %174 = vmatpush1.msra.mxu0 0.0
    %175 = vmatprep.subr.mxu0 0.0
    %176 = vmatpush1.msra.mxu0 0.0
    %177 = vmatprep.subr.mxu0 0.0
    %178 = vmatpush1.msra.mxu0 0.0
    %179 = vmatprep.subr.mxu0 0.0
    %180 = vmatpush1.msra.mxu0 0.0
    %181 = vmatprep.subr.mxu0 0.0
    %182 = vmatpush1.msra.mxu0 0.0
    %183 = vmatprep.subr.mxu0 0.0
    %184 = vmatpush1.msra.mxu0 0.0
    %185 = vmatprep.subr.mxu0 0.0
    %186 = vmatpush1.msra.mxu0 0.0
    %187 = vmatprep.subr.mxu0 0.0
    %188 = vmatpush1.msra.mxu0 0.0
    %189 = vmatprep.subr.mxu0 0.0
    %190 = vmatpush1.msra.mxu0 0.0
    %191 = vmatprep.subr.mxu0 0.0
    %192 = vmatpush1.msra.mxu0 0.0
    %193 = vmatprep.subr.mxu0 0.0
    %194 = vmatpush1.msra.mxu0 0.0
    %195 = vmatprep.subr.mxu0 0.0
    %196 = vmatpush1.msra.mxu0 0.0
    %197 = vmatprep.subr.mxu0 0.0
    %198 = vmatpush1.msra.mxu0 0.0
    %199 = vmatprep.mubr.f32.mxu0 0.0
    %200 = vmatmul.mubr.f32.gmra.mrb[0].mxu0 %v118
    %v201 = vpop.f32.mrb[0].mxu0
    %v202 = vadd.f32 0.0, %v201
    %v203 = vpop.f32.mrb[0].mxu0
    %204 = vdwg.mxu0
    %v205 = vld [vmem:[%s4] sm:$0x1]
    %v206 = vld [vmem:[%s5] sm:$0x1]
    %v207 = vsel %vm36, %v202, 0.0
    %208 = vadd.xlane.f32.xlu0 %v207
    %v209 = vpop.xlane.xlu0 %208
    %v210 = vrcp.pop 32.0
    %v211 = vmul.f32 %v209, %v210
    %v212 = vsub.f32 %v202, %v211
    %v213 = vmul.f32 %v212, %v212
    %v214 = vsel %vm36, %v213, 0.0
    %215 = vadd.xlane.f32.xlu0 %v214
    %v216 = vpop.xlane.xlu0 %215
    %v217 = vmul.f32 %v216, %v210
    %v218 = vadd.f32 %v217, 1e-05
    %v219 = vrsqrt.pop %v218
    %v220 = vmul.f32 %v212, %v219
    %v222 = vlaneseq
    %v223 = vshrl.u32 %v222, 7
    %v224 = vsub.s32 0, %v223
    %v225 = vrot.slane %v205, %v224
    %v227 = vmul.f32 %v220, %v225
    %v229 = vlaneseq
    %v230 = vshrl.u32 %v229, 7
    %v231 = vsub.s32 0, %v230
    %v232 = vrot.slane %v206, %v231
    %v234 = vadd.f32 %v227, %v232
    %235 = vst.msk [vmem:[#allocation2] sm:$0xff] %vm36, %v234
    // Predicated region
    $region26: #{tpu_custom_call.1} parent=1 // pred_check
      _
    $region27: #{tpu_custom_call.1} parent=1 // pred_check_branch
      %237 = sbr.rel (0) target = $region29
    $region28: #{tpu_custom_call.1} parent=1 // pred_region
      %s239 = ssub.s32 128, 128
      %240 = vsyncadd [#allocation3], %s239
      %s242 = sshll.u32 [#allocation2], 4
      %s243 = int_to_ptr.vmem [resolvable:$true] %s242
      %245 = dma.vmem_to_hbm [thread:$0]  %s243, 128, %s6, [#allocation3]
    $region29: #{tpu_custom_call.1} parent=1 // pred_fallthru
      _
    // Predicated region
    $region30: #{tpu_custom_call.1} parent=1 // pred_check
      _
    $region31: #{tpu_custom_call.1} parent=1 // pred_check_branch
      %247 = sbr.rel (0) target = $region33
    $region32: #{tpu_custom_call.1} parent=1 // pred_region
      %s249 = ssub.s32 256, 256
      %250 = vsyncadd [#allocation5], %s249
      %s252 = sshll.u32 [#allocation4], 4
      %s253 = int_to_ptr.vmem [resolvable:$true] %s252
      %255 = dma.vmem_to_hbm [thread:$0]  %s253, 256, %s7, [#allocation5]
    $region33: #{tpu_custom_call.1} parent=1 // pred_fallthru
      _
    // Predicated region
    $region34: #{tpu_custom_call.1} parent=1 // pred_check
      _
    $region35: #{tpu_custom_call.1} parent=1 // pred_check_branch
      %257 = sbr.rel (0) target = $region37
    $region36: #{tpu_custom_call.1} parent=1 // pred_region
      %258 = dma.done [#allocation3], 128
    $region37: #{tpu_custom_call.1} parent=1 // pred_fallthru
      _
    // Predicated region
    $region38: #{tpu_custom_call.1} parent=1 // pred_check
      _
    $region39: #{tpu_custom_call.1} parent=1 // pred_check_branch
      %260 = sbr.rel (0) target = $region41
    $region40: #{tpu_custom_call.1} parent=1 // pred_region
      %261 = dma.done [#allocation5], 256
    $region41: #{tpu_custom_call.1} parent=1 // pred_fallthru
      _
    %262 = vsyncpa [#allocation3], 1
    %263 = vsyncpa [#allocation5], 1

// kernel: tpu_custom_call.1
$region0: #{tpu_custom_call.1}
  #allocation0 [shape = 'u32[]', space=smem, size = 0x4, offset = 0x4, fixed_abs, tag = 'smem constant byte address 0x4 - core index']
  #allocation1 [shape = 'u32[144,128]{1,0:T(1,128)}', space=vmem, size = 0x12000, scoped, tag = 'internal scratch']
  %s0 = inlined_call_operand.vmem [shape: f32[8,32], index: 0, kind: input, shape index: {}]
  %s1 = inlined_call_operand.vmem [shape: f32[32,256], index: 1, kind: input, shape index: {}]
  %s2 = inlined_call_operand.vmem [shape: f32[128,32], index: 2, kind: input, shape index: {}]
  %s3 = inlined_call_operand.vmem [shape: f32[8,128], index: 3, kind: input, shape index: {}]
  %s4 = inlined_call_operand.vmem [shape: f32[1,32], index: 4, kind: input, shape index: {}]
  %s5 = inlined_call_operand.vmem [shape: f32[1,32], index: 5, kind: input, shape index: {}]
  %s6 = inlined_call_operand.hbm [shape: f32[8,32], index: 6, kind: output, shape index: {0}]
  %s7 = inlined_call_operand.hbm [shape: f32[8,256], index: 7, kind: output, shape index: {1}]
  %8 = xla_tuple %s6, %s7
  %s9 = sld [smem:[#allocation0]]
  $region42: #{tpu_custom_call.1} parent=0
    _
  %s11 = ssub.s32 1, %s9
  %s12 = scalar_select 0, %s11, %s9
  $region1: #{tpu_custom_call.1} parent=0
    #allocation2 [shape = 'u8[4096]{0}', space=vmem, size = 0x1000, scoped, tag = 'output window, operand 0, single buffered']
    #allocation3 [shape = 's32[1]{0}', space=sflag, size = 0x4, scoped, tag = 'scoped memory for tpu_custom_call.1']
    #allocation4 [shape = 'u8[8192]{0}', space=vmem, size = 0x2000, scoped, tag = 'output window, operand 1, single buffered']
    #allocation5 [shape = 's32[1]{0}', space=sflag, size = 0x4, scoped, tag = 'scoped memory for tpu_custom_call.1']
    %13 = vsyncpa [#allocation3], 0
    %14 = vsyncpa [#allocation5], 0
    // Predicated region
    $region2: #{tpu_custom_call.1} parent=1 // pred_check
      _
    $region3: #{tpu_custom_call.1} parent=1 // pred_check_branch
      %16 = sbr.rel (0) target = $region5
    $region4: #{tpu_custom_call.1} parent=1 // pred_region
      _
    $region5: #{tpu_custom_call.1} parent=1 // pred_fallthru
      _
    // Predicated region
    $region6: #{tpu_custom_call.1} parent=1 // pred_check
      _
    $region7: #{tpu_custom_call.1} parent=1 // pred_check_branch
      %18 = sbr.rel (0) target = $region9
    $region8: #{tpu_custom_call.1} parent=1 // pred_region
      _
    $region9: #{tpu_custom_call.1} parent=1 // pred_fallthru
      _
    // Predicated region
    $region10: #{tpu_custom_call.1} parent=1 // pred_check
      _
    $region11: #{tpu_custom_call.1} parent=1 // pred_check_branch
      %20 = sbr.rel (0) target = $region13
    $region12: #{tpu_custom_call.1} parent=1 // pred_region
      _
    $region13: #{tpu_custom_call.1} parent=1 // pred_fallthru
      _
    // Predicated region
    $region14: #{tpu_custom_call.1} parent=1 // pred_check
      _
    $region15: #{tpu_custom_call.1} parent=1 // pred_check_branch
      %22 = sbr.rel (0) target = $region17
    $region16: #{tpu_custom_call.1} parent=1 // pred_region
      _
    $region17: #{tpu_custom_call.1} parent=1 // pred_fallthru
      _
    // Predicated region
    $region18: #{tpu_custom_call.1} parent=1 // pred_check
      _
    $region19: #{tpu_custom_call.1} parent=1 // pred_check_branch
      %24 = sbr.rel (0) target = $region21
    $region20: #{tpu_custom_call.1} parent=1 // pred_region
      _
    $region21: #{tpu_custom_call.1} parent=1 // pred_fallthru
      _
    // Predicated region
    $region22: #{tpu_custom_call.1} parent=1 // pred_check
      _
    $region23: #{tpu_custom_call.1} parent=1 // pred_check_branch
      %26 = sbr.rel (0) target = $region25
    $region24: #{tpu_custom_call.1} parent=1 // pred_region
      _
    $region25: #{tpu_custom_call.1} parent=1 // pred_fallthru
      _
    %v27 = vld [vmem:[%s0] sm:$0xff]
    %v28 = vld [vmem:[%s1] sm:$0xff]
    %v29 = vld [vmem:[%s1 + $0x8] sm:$0xff]
    %v30 = vld [vmem:[%s1 + $0x10] sm:$0xff]
    %v31 = vld [vmem:[%s1 + $0x18] sm:$0xff]
    %v32 = vld [vmem:[%s1 + $0x20] sm:$0xff]
    %v33 = vld [vmem:[%s1 + $0x28] sm:$0xff]
    %v34 = vld [vmem:[%s1 + $0x30] sm:$0xff]
    %v35 = vld [vmem:[%s1 + $0x38] sm:$0xff]
    %vm36 = vcmask 261120
    %v38 = vsel %vm36, %v27, 0
    %40 = vmatprep.subr.mxu0 %v29
    %41 = vmatpush1.msra.mxu0 %v28
    %42 = vmatprep.subr.mxu0 %v31
    %43 = vmatpush1.msra.mxu0 %v30
    %44 = vmatprep.subr.mxu0 %v33
    %45 = vmatpush1.msra.mxu0 %v32
    %46 = vmatprep.subr.mxu0 %v35
    %47 = vmatpush1.msra.mxu0 %v34
    %48 = vmatprep.subr.mxu0 0.0
    %49 = vmatpush1.msra.mxu0 0.0
    %50 = vmatprep.subr.mxu0 0.0
    %51 = vmatpush1.msra.mxu0 0.0
    %52 = vmatprep.subr.mxu0 0.0
    %53 = vmatpush1.msra.mxu0 0.0
    %54 = vmatprep.subr.mxu0 0.0
    %55 = vmatpush1.msra.mxu0 0.0
    %56 = vmatprep.subr.mxu0 0.0
    %57 = vmatpush1.msra.mxu0 0.0
    %58 = vmatprep.subr.mxu0 0.0
    %59 = vmatpush1.msra.mxu0 0.0
    %60 = vmatprep.subr.mxu0 0.0
    %61 = vmatpush1.msra.mxu0 0.0
    %62 = vmatprep.subr.mxu0 0.0
    %63 = vmatpush1.msra.mxu0 0.0
    %64 = vmatprep.subr.mxu0 0.0
    %65 = vmatpush1.msra.mxu0 0.0
    %66 = vmatprep.subr.mxu0 0.0
    %67 = vmatpush1.msra.mxu0 0.0
    %68 = vmatprep.subr.mxu0 0.0
    %69 = vmatpush1.msra.mxu0 0.0
    %70 = vmatprep.subr.mxu0 0.0
    %71 = vmatpush1.msra.mxu0 0.0
    %72 = vmatprep.subr.mxu0 0.0
    %73 = vmatpush1.msra.mxu0 0.0
    %74 = vmatprep.subr.mxu0 0.0
    %75 = vmatpush1.msra.mxu0 0.0
    %76 = vmatprep.subr.mxu0 0.0
    %77 = vmatpush1.msra.mxu0 0.0
    %78 = vmatprep.subr.mxu0 0.0
    %79 = vmatpush1.msra.mxu0 0.0
    %80 = vmatprep.subr.mxu0 0.0
    %81 = vmatpush1.msra.mxu0 0.0
    %82 = vmatprep.subr.mxu0 0.0
    %83 = vmatpush1.msra.mxu0 0.0
    %84 = vmatprep.subr.mxu0 0.0
    %85 = vmatpush1.msra.mxu0 0.0
    %86 = vmatprep.subr.mxu0 0.0
    %87 = vmatpush1.msra.mxu0 0.0
    %88 = vmatprep.subr.mxu0 0.0
    %89 = vmatpush1.msra.mxu0 0.0
    %90 = vmatprep.subr.mxu0 0.0
    %91 = vmatpush1.msra.mxu0 0.0
    %92 = vmatprep.subr.mxu0 0.0
    %93 = vmatpush1.msra.mxu0 0.0
    %94 = vmatprep.subr.mxu0 0.0
    %95 = vmatpush1.msra.mxu0 0.0
    %96 = vmatprep.subr.mxu0 0.0
    %97 = vmatpush1.msra.mxu0 0.0
    %98 = vmatprep.subr.mxu0 0.0
    %99 = vmatpush1.msra.mxu0 0.0
    %100 = vmatprep.subr.mxu0 0.0
    %101 = vmatpush1.msra.mxu0 0.0
    %102 = vmatprep.subr.mxu0 0.0
    %103 = vmatpush1.msra.mxu0 0.0
    %104 = vmatprep.mubr.f32.mxu0 0.0
    %105 = vmatmul.mubr.f32.gmra.mrb[0].mxu0 %v38
    %v106 = vpop.f32.mrb[0].mxu0
    %v107 = vadd.f32 0.0, %v106
    %v108 = vpop.f32.mrb[0].mxu0
    %v109 = vadd.f32 0.0, %v108
    %110 = vdwg.mxu0
    %111 = vst [vmem:[#allocation4] sm:$0xff] %v107
    %112 = vst [vmem:[#allocation4 + $0x8] sm:$0xff] %v109
    %v113 = vld [vmem:[%s3] sm:$0xff]
    %v114 = vmul.f32 %v109, 0.5
    %v115 = vmul.f32 %v114, 1.442695
    %v116 = vpow.pop %v115
    %v117 = vmul.f32 %v113, %v116
    %v118 = vadd.f32 %v117, %v107
    %v119 = vld [vmem:[%s2] sm:$0xff]
    %v120 = vld [vmem:[%s2 + $0x8] sm:$0xff]
    %v121 = vld [vmem:[%s2 + $0x10] sm:$0xff]
    %v122 = vld [vmem:[%s2 + $0x18] sm:$0xff]
    %v123 = vld [vmem:[%s2 + $0x20] sm:$0xff]
    %v124 = vld [vmem:[%s2 + $0x28] sm:$0xff]
    %v125 = vld [vmem:[%s2 + $0x30] sm:$0xff]
    %v126 = vld [vmem:[%s2 + $0x38] sm:$0xff]
    %v127 = vld [vmem:[%s2 + $0x40] sm:$0xff]
    %v128 = vld [vmem:[%s2 + $0x48] sm:$0xff]
    %v129 = vld [vmem:[%s2 + $0x50] sm:$0xff]
    %v130 = vld [vmem:[%s2 + $0x58] sm:$0xff]
    %v131 = vld [vmem:[%s2 + $0x60] sm:$0xff]
    %v132 = vld [vmem:[%s2 + $0x68] sm:$0xff]
    %v133 = vld [vmem:[%s2 + $0x70] sm:$0xff]
    %v134 = vld [vmem:[%s2 + $0x78] sm:$0xff]
    %135 = vmatprep.subr.mxu0 0.0
    %136 = vmatpush1.msra.mxu0 %v119
    %137 = vmatprep.subr.mxu0 0.0
    %138 = vmatpush1.msra.mxu0 %v120
    %139 = vmatprep.subr.mxu0 0.0
    %140 = vmatpush1.msra.mxu0 %v121
    %141 = vmatprep.subr.mxu0 0.0
    %142 = vmatpush1.msra.mxu0 %v122
    %143 = vmatprep.subr.mxu0 0.0
    %144 = vmatpush1.msra.mxu0 %v123
    %145 = vmatprep.subr.mxu0 0.0
    %146 = vmatpush1.msra.mxu0 %v124
    %147 = vmatprep.subr.mxu0 0.0
    %148 = vmatpush1.msra.mxu0 %v125
    %149 = vmatprep.subr.mxu0 0.0
    %150 = vmatpush1.msra.mxu0 %v126
    %151 = vmatprep.subr.mxu0 0.0
    %152 = vmatpush1.msra.mxu0 %v127
    %153 = vmatprep.subr.mxu0 0.0
    %154 = vmatpush1.msra.mxu0 %v128
    %155 = vmatprep.subr.mxu0 0.0
    %156 = vmatpush1.msra.mxu0 %v129
    %157 = vmatprep.subr.mxu0 0.0
    %158 = vmatpush1.msra.mxu0 %v130
    %159 = vmatprep.subr.mxu0 0.0
    %160 = vmatpush1.msra.mxu0 %v131
    %161 = vmatprep.subr.mxu0 0.0
    %162 = vmatpush1.msra.mxu0 %v132
    %163 = vmatprep.subr.mxu0 0.0
    %164 = vmatpush1.msra.mxu0 %v133
    %165 = vmatprep.subr.mxu0 0.0
    %166 = vmatpush1.msra.mxu0 %v134
    %167 = vmatprep.subr.mxu0 0.0
    %168 = vmatpush1.msra.mxu0 0.0
    %169 = vmatprep.subr.mxu0 0.0
    %170 = vmatpush1.msra.mxu0 0.0
    %171 = vmatprep.subr.mxu0 0.0
    %172 = vmatpush1.msra.mxu0 0.0
    %173 = vmatprep.subr.mxu0 0.0
    %174 = vmatpush1.msra.mxu0 0.0
    %175 = vmatprep.subr.mxu0 0.0
    %176 = vmatpush1.msra.mxu0 0.0
    %177 = vmatprep.subr.mxu0 0.0
    %178 = vmatpush1.msra.mxu0 0.0
    %179 = vmatprep.subr.mxu0 0.0
    %180 = vmatpush1.msra.mxu0 0.0
    %181 = vmatprep.subr.mxu0 0.0
    %182 = vmatpush1.msra.mxu0 0.0
    %183 = vmatprep.subr.mxu0 0.0
    %184 = vmatpush1.msra.mxu0 0.0
    %185 = vmatprep.subr.mxu0 0.0
    %186 = vmatpush1.msra.mxu0 0.0
    %187 = vmatprep.subr.mxu0 0.0
    %188 = vmatpush1.msra.mxu0 0.0
    %189 = vmatprep.subr.mxu0 0.0
    %190 = vmatpush1.msra.mxu0 0.0
    %191 = vmatprep.subr.mxu0 0.0
    %192 = vmatpush1.msra.mxu0 0.0
    %193 = vmatprep.subr.mxu0 0.0
    %194 = vmatpush1.msra.mxu0 0.0
    %195 = vmatprep.subr.mxu0 0.0
    %196 = vmatpush1.msra.mxu0 0.0
    %197 = vmatprep.subr.mxu0 0.0
    %198 = vmatpush1.msra.mxu0 0.0
    %199 = vmatprep.mubr.f32.mxu0 0.0
    %200 = vmatmul.mubr.f32.gmra.mrb[0].mxu0 %v118
    %v201 = vpop.f32.mrb[0].mxu0
    %v202 = vadd.f32 0.0, %v201
    %v203 = vpop.f32.mrb[0].mxu0
    %204 = vdwg.mxu0
    %v205 = vld [vmem:[%s4] sm:$0x1]
    %v206 = vld [vmem:[%s5] sm:$0x1]
    %v207 = vsel %vm36, %v202, 0.0
    %208 = vadd.xlane.f32.xlu0 %v207
    %v209 = vpop.xlane.xlu0 %208
    %v210 = vrcp.pop 32.0
    %v211 = vmul.f32 %v209, %v210
    %v212 = vsub.f32 %v202, %v211
    %v213 = vmul.f32 %v212, %v212
    %v214 = vsel %vm36, %v213, 0.0
    %215 = vadd.xlane.f32.xlu0 %v214
    %v216 = vpop.xlane.xlu0 %215
    %v217 = vmul.f32 %v216, %v210
    %v218 = vadd.f32 %v217, 1e-05
    %v219 = vrsqrt.pop %v218
    %v220 = vmul.f32 %v212, %v219
    %v222 = vlaneseq
    %v223 = vshrl.u32 %v222, 7
    %v224 = vsub.s32 0, %v223
    %v225 = vrot.slane %v205, %v224
    %v227 = vmul.f32 %v220, %v225
    %v229 = vlaneseq
    %v230 = vshrl.u32 %v229, 7
    %v231 = vsub.s32 0, %v230
    %v232 = vrot.slane %v206, %v231
    %v234 = vadd.f32 %v227, %v232
    %235 = vst.msk [vmem:[#allocation2] sm:$0xff] %vm36, %v234
    // Predicated region
    $region26: #{tpu_custom_call.1} parent=1 // pred_check
      _
    $region27: #{tpu_custom_call.1} parent=1 // pred_check_branch
      %237 = sbr.rel (0) target = $region29
    $region28: #{tpu_custom_call.1} parent=1 // pred_region
      %s239 = ssub.s32 128, 128
      %240 = vsyncadd [#allocation3], %s239
      %s242 = sshll.u32 [#allocation2], 4
      %s243 = int_to_ptr.vmem [resolvable:$true] %s242
      %245 = dma.vmem_to_hbm [thread:$0]  %s243, 128, %s6, [#allocation3]
    $region29: #{tpu_custom_call.1} parent=1 // pred_fallthru
      _
    // Predicated region
    $region30: #{tpu_custom_call.1} parent=1 // pred_check
      _
    $region31: #{tpu_custom_call.1} parent=1 // pred_check_branch
      %247 = sbr.rel (0) target = $region33
    $region32: #{tpu_custom_call.1} parent=1 // pred_region
      %s249 = ssub.s32 256, 256
      %250 = vsyncadd [#allocation5], %s249
      %s252 = sshll.u32 [#allocation4], 4
      %s253 = int_to_ptr.vmem [resolvable:$true] %s252
      %255 = dma.vmem_to_hbm [thread:$0]  %s253, 256, %s7, [#allocation5]
    $region33: #{tpu_custom_call.1} parent=1 // pred_fallthru
      _
    // Predicated region
    $region34: #{tpu_custom_call.1} parent=1 // pred_check
      _
    $region35: #{tpu_custom_call.1} parent=1 // pred_check_branch
      %257 = sbr.rel (0) target = $region37
    $region36: #{tpu_custom_call.1} parent=1 // pred_region
      %258 = dma.done [#allocation3], 128
    $region37: #{tpu_custom_call.1} parent=1 // pred_fallthru
      _
    // Predicated region
    $region38: #{tpu_custom_call.1} parent=1 // pred_check
      _
    $region39: #{tpu_custom_call.1} parent=1 // pred_check_branch
      %260 = sbr.rel (0) target = $region41
    $region40: #{tpu_custom_call.1} parent=1 // pred_region
      %261 = dma.done [#allocation5], 256
    $region41: #{tpu_custom_call.1} parent=1 // pred_fallthru
      _
    %262 = vsyncpa [#allocation3], 1
    %263 = vsyncpa [#allocation5], 1

</llo_original>
